<compile_context>
chip_gen: v5e
topology: v5e:2x2
jax: 0.10.0
libtpu: 0.0.40
codegen_flags: <defaults>
</compile_context>

<pallas_src>
import functools

import jax
import jax.numpy as jnp
from jax import lax
from jax.experimental import pallas as pl
from jax.experimental.pallas import tpu as pltpu


def _matvec_kernel(x_ref, w_ref, o_ref, acc_ref, *, d_total, td, d_ragged):
    """One (tb, td) x-block times the matching (td, 1) weight chunk on the MXU,
    accumulated in f32 over the D grid axis."""
    k = pl.program_id(1)

    @pl.when(k == 0)
    def _init():
        acc_ref[...] = jnp.zeros_like(acc_ref)

    x = x_ref[...]
    w = w_ref[...]
    if d_ragged:
        # Final D chunk reads past D; out-of-bounds lanes hold unspecified
        # data, so zero both operands beyond the valid width to keep the
        # reduction exact.  (Only generated when D % td != 0.)
        valid = d_total - k * td
        col = lax.broadcasted_iota(jnp.int32, x.shape, dimension=1)
        row = lax.broadcasted_iota(jnp.int32, w.shape, dimension=0)
        x = jnp.where(col < valid, x, jnp.zeros_like(x))
        w = jnp.where(row < valid, w, jnp.zeros_like(w))

    acc_ref[...] += jnp.dot(x, w, preferred_element_type=jnp.float32)

    @pl.when(k == pl.num_programs(1) - 1)
    def _finalize():
        o_ref[...] = acc_ref[...].astype(o_ref.dtype)


def _choose_tiles(batch: int, dim: int):
    """Byte-sized tiling: (tb, td) such that the double-buffered f32 x block
    plus the lane-padded (tb, 1) output/accumulator fit a ~20 MiB VMEM budget
    (safe on v5e/v6e/v7x with vmem_limit_bytes = 32 MiB)."""
    TD_MAX = 2048  # per-chunk reduction width; keeps the 128-lane-padded
    #                weight tile <= ~1 MiB per buffer on the MXU path.
    td = dim if dim <= TD_MAX else TD_MAX

    # VMEM bytes per batch row:
    #   x block  : 2 buffers * td * 4 B
    #   output   : 2 buffers * 128 lanes * 4 B   ((tb, 1) is lane-padded)
    #   acc      : 1 buffer  * 128 lanes * 4 B
    per_row_bytes = 8 * td + 1536
    budget_bytes = 20 * 1024 * 1024
    tb = max(8, (budget_bytes // per_row_bytes) // 8 * 8)

    # Keep >= 8 batch grid steps when the batch allows it: v7x shards the
    # "parallel" axis across its two TensorCores and each core still pipelines
    # several blocks.  (For small B this just clamps tb to ~B.)
    min_steps = 8
    rows_cap = (batch + min_steps - 1) // min_steps
    rows_cap = max(8, ((rows_cap + 7) // 8) * 8)
    tb = min(tb, rows_cap)
    return tb, td


def vertical_logistic_regression_forward(x, weight):
    """Forward pass of VerticalLogisticRegression: self.linear(x), bias=False.

    Args:
      x:      [B, D] float32 input features.
      weight: [1, D] float32 nn.Linear weight (torch layout).

    Returns:
      [B, 1] float32 logits, identical to x @ weight.T.
    """
    B, D = x.shape
    assert weight.shape == (1, D)

    tb, td = _choose_tiles(B, D)
    nb = pl.cdiv(B, tb)
    nd = pl.cdiv(D, td)
    d_ragged = (D % td) != 0

    # Lane-dense torch weight [1, D] -> (D, 1) column operand for the MXU.
    w_col = weight.reshape(D, 1)

    kernel = functools.partial(
        _matvec_kernel, d_total=D, td=td, d_ragged=d_ragged
    )

    out = pl.pallas_call(
        kernel,
        out_shape=jax.ShapeDtypeStruct((B, 1), jnp.float32),
        grid=(nb, nd),
        in_specs=[
            pl.BlockSpec((tb, td), lambda i, k: (i, k)),  # stream x blocks
            pl.BlockSpec((td, 1), lambda i, k: (k, 0)),   # weight chunk
        ],
        out_specs=pl.BlockSpec((tb, 1), lambda i, k: (i, 0)),
        scratch_shapes=[pltpu.VMEM((tb, 1), jnp.float32)],
        compiler_params=pltpu.CompilerParams(
            dimension_semantics=("parallel", "arbitrary"),
            vmem_limit_bytes=32 * 1024 * 1024,
        ),
        cost_estimate=pl.CostEstimate(
            flops=2 * B * D,
            transcendentals=0,
            bytes_accessed=4 * (B * D + D + B),
        ),
    )(x, w_col)

    # Note: rows of the last (ragged) batch block beyond B never reach `out`
    # (out-of-bounds writes are dropped), so no slicing/padding is needed.
    return out


if __name__ == "__main__":
    # Small shapes consistent with the module: batch=8, input_dim=32.
    B, D = 8, 32
    key = jax.random.PRNGKey(0)
    kx, kw = jax.random.split(key)

    x = jax.random.normal(kx, (B, D), dtype=jnp.float32)

    # Deterministic init mimicking torch.nn.Linear's U(-1/sqrt(D), 1/sqrt(D));
    # torch weight shape is [1, D], bias=False.
    bound = 1.0 / jnp.sqrt(jnp.float32(D))
    weight = jax.random.uniform(
        kw, (1, D), dtype=jnp.float32, minval=-bound, maxval=bound
    )

    out = vertical_logistic_regression_forward(x, weight)
    out = jax.block_until_ready(out)

    # Reference in plain JAX (same semantics as the torch linear).
    ref = x @ weight.T
    assert out.shape == (B, 1)
    assert jnp.allclose(out, ref, atol=1e-5, rtol=1e-5)

    print("KERNEL_OK")
</pallas_src>

<mosaic_0001>
module attributes {stable_mosaic.version = 11 : i64} {
  func.func @_matvec_kernel(%arg0: i32, %arg1: i32, %arg2: memref<8x32xf32, #tpu.memory_space<vmem>>, %arg3: memref<32x1xf32, #tpu.memory_space<vmem>>, %arg4: memref<8x1xf32, #tpu.memory_space<vmem>>, %arg5: memref<8x1xf32, #tpu.memory_space<vmem>>) attributes {dimension_semantics = [#tpu.dimension_semantics<parallel>, #tpu.dimension_semantics<arbitrary>], iteration_bounds = array<i64: 1, 1>, scalar_prefetch = 0 : i64, scratch_operands = 1 : i64, tpu.core_type = #tpu.core_type<tc>, window_params = [{transform_indices = @transform_0, window_bounds = array<i64: 8, 32>}, {transform_indices = @transform_1, window_bounds = array<i64: 32, 1>}, {transform_indices = @transform_2, window_bounds = array<i64: 8, 1>}]} {
    %c0_i32 = arith.constant 0 : i32
    %0 = arith.cmpi eq, %arg1, %c0_i32 : i32
    %1 = arith.extui %0 : i1 to i32
    %c0_i32_0 = arith.constant 0 : i32
    %2 = arith.cmpi ne, %1, %c0_i32_0 : i32
    scf.if %2 {
      %cst_10 = arith.constant 0.000000e+00 : f32
      %12 = vector.broadcast %cst_10 : f32 to vector<8x1xf32>
      %c0_11 = arith.constant 0 : index
      %c0_12 = arith.constant 0 : index
      %13 = vector.load %arg5[%c0_11, %c0_12] : memref<8x1xf32, #tpu.memory_space<vmem>>, vector<8x1xf32>
      tpu.vector_store %arg5[%c0_11, %c0_12], %12 {strides = array<i32>} : memref<8x1xf32, #tpu.memory_space<vmem>>, vector<8x1xf32>,
    } else {
    }
    %c0 = arith.constant 0 : index
    %c0_1 = arith.constant 0 : index
    %3 = vector.load %arg2[%c0, %c0_1] : memref<8x32xf32, #tpu.memory_space<vmem>>, vector<8x32xf32>
    %c0_2 = arith.constant 0 : index
    %c0_3 = arith.constant 0 : index
    %4 = vector.load %arg3[%c0_2, %c0_3] : memref<32x1xf32, #tpu.memory_space<vmem>>, vector<32x1xf32>
    %c0_4 = arith.constant 0 : index
    %c0_5 = arith.constant 0 : index
    %5 = vector.load %arg5[%c0_4, %c0_5] : memref<8x1xf32, #tpu.memory_space<vmem>>, vector<8x1xf32>
    %cst = arith.constant dense<0.000000e+00> : vector<8x1xf32>
    %6 = tpu.matmul %3, %4, %cst {dimension_numbers = #tpu.dot_dimension_numbers<[1], [0], [0], [1], [0, 0, 1, 1], [], []>} : vector<8x32xf32>, vector<32x1xf32>, vector<8x1xf32> -> vector<8x1xf32>
    %7 = arith.addf %5, %6 : vector<8x1xf32>
    %c0_6 = arith.constant 0 : index
    %c0_7 = arith.constant 0 : index
    %8 = vector.load %arg5[%c0_6, %c0_7] : memref<8x1xf32, #tpu.memory_space<vmem>>, vector<8x1xf32>
    tpu.vector_store %arg5[%c0_6, %c0_7], %7 {strides = array<i32>} : memref<8x1xf32, #tpu.memory_space<vmem>>, vector<8x1xf32>,
    %c0_i32_8 = arith.constant 0 : i32
    %9 = arith.cmpi eq, %arg1, %c0_i32_8 : i32
    %10 = arith.extui %9 : i1 to i32
    %c0_i32_9 = arith.constant 0 : i32
    %11 = arith.cmpi ne, %10, %c0_i32_9 : i32
    scf.if %11 {
      %c0_10 = arith.constant 0 : index
      %c0_11 = arith.constant 0 : index
      %12 = vector.load %arg5[%c0_10, %c0_11] : memref<8x1xf32, #tpu.memory_space<vmem>>, vector<8x1xf32>
      %c0_12 = arith.constant 0 : index
      %c0_13 = arith.constant 0 : index
      %13 = vector.load %arg4[%c0_12, %c0_13] : memref<8x1xf32, #tpu.memory_space<vmem>>, vector<8x1xf32>
      tpu.vector_store %arg4[%c0_12, %c0_13], %12 {strides = array<i32>} : memref<8x1xf32, #tpu.memory_space<vmem>>, vector<8x1xf32>,
    } else {
    }
    return
  }
  func.func @transform_0(%arg0: i32, %arg1: i32) -> (i32, i32) {
    %c0_i32 = arith.constant 0 : i32
    return %arg0, %arg1 : i32, i32
  }
  func.func @transform_1(%arg0: i32, %arg1: i32) -> (i32, i32) {
    %c0_i32 = arith.constant 0 : i32
    %c0_i32_0 = arith.constant 0 : i32
    return %arg1, %c0_i32 : i32, i32
  }
  func.func @transform_2(%arg0: i32, %arg1: i32) -> (i32, i32) {
    %c0_i32 = arith.constant 0 : i32
    %c0_i32_0 = arith.constant 0 : i32
    return %arg0, %c0_i32 : i32, i32
  }
}

</mosaic_0001>

<llo_original>
// kernel: tpu_custom_call.1
$region0: #{tpu_custom_call.1}
  #allocation0 [shape = 'u32[]', space=smem, size = 0x4, offset = 0x4, fixed_abs, tag = 'smem constant byte address 0x4 - core index']
  #allocation1 [shape = 'u32[72,128]{1,0:T(1,128)}', space=vmem, size = 0x9000, scoped, tag = 'internal scratch']
  #allocation2 [shape = 'f32[8,1]{1,0:T(8,128)}', space=vmem, size = 0x1000, scoped, tag = 'scratch operand']
  %s0 = inlined_call_operand.vmem [shape: f32[8,32], index: 0, kind: input, shape index: {}]
  %s1 = inlined_call_operand.vmem [shape: f32[32,1], index: 1, kind: input, shape index: {}]
  %s2 = inlined_call_operand.vmem [shape: f32[8,1], index: 2, kind: output, shape index: {}]
  %s3 = sld [smem:[#allocation0]]
  $region26: #{tpu_custom_call.1} parent=0
    _
  %s5 = ssub.s32 1, %s3
  %s6 = scalar_select 0, %s5, %s3
  // Predicated region
  $region2: #{tpu_custom_call.1} parent=0 // pred_check
    _
  $region3: #{tpu_custom_call.1} parent=0 // pred_check_branch
    %8 = sbr.rel (0) target = $region5
  $region4: #{tpu_custom_call.1} parent=0 // pred_region
    _
  $region5: #{tpu_custom_call.1} parent=0 // pred_fallthru
    _
  // Predicated region
  $region6: #{tpu_custom_call.1} parent=0 // pred_check
    _
  $region7: #{tpu_custom_call.1} parent=0 // pred_check_branch
    %10 = sbr.rel (0) target = $region9
  $region8: #{tpu_custom_call.1} parent=0 // pred_region
    _
  $region9: #{tpu_custom_call.1} parent=0 // pred_fallthru
    _
  %p11 = scmp.eq.s32.totalorder 0, 0
  // Predicated region
  $region10: #{tpu_custom_call.1} parent=0 // pred_check
    %p12 = pneg %p11
  $region11: #{tpu_custom_call.1} parent=0 // pred_check_branch
    %14 = sbr.rel (%p12) target = $region13
  $region12: #{tpu_custom_call.1} parent=0 // pred_region
    %vm15 = vcmask 7168
    %16 = vst.msk [vmem:[#allocation2] sm:$0xff] %vm15, 0.0
  $region13: #{tpu_custom_call.1} parent=0 // pred_fallthru
    _
  %v17 = vld [vmem:[%s0] sm:$0xff]
  %v18 = vld [vmem:[%s1] sm:$0xff]
  %v19 = vld [vmem:[%s1 + $0x8] sm:$0xff]
  %v20 = vld [vmem:[%s1 + $0x10] sm:$0xff]
  %v21 = vld [vmem:[%s1 + $0x18] sm:$0xff]
  %v22 = vld [vmem:[#allocation2] sm:$0xff]
  %vm23 = vcmask 261120
  %v25 = vsel %vm23, %v17, 0
  %27 = vmatpush.msra.mxu0 0.0
  %28 = vmatpush.msra.mxu0 0.0
  %29 = vmatpush.msra.mxu0 0.0
  %30 = vmatpush.msra.mxu0 0.0
  %31 = vmatpush.msra.mxu0 0.0
  %32 = vmatpush.msra.mxu0 0.0
  %33 = vmatpush.msra.mxu0 0.0
  %34 = vmatpush.msra.mxu0 0.0
  %35 = vmatpush.msra.mxu0 0.0
  %36 = vmatpush.msra.mxu0 0.0
  %37 = vmatpush.msra.mxu0 0.0
  %38 = vmatpush.msra.mxu0 0.0
  %39 = vmatpush.msra.mxu0 %v21
  %40 = vmatpush.msra.mxu0 %v20
  %41 = vmatpush.msra.mxu0 %v19
  %42 = vmatpush.msra.mxu0 %v18
  %43 = vmatmul.f32.gmra.mxu0 %v25
  %v44 = vpop.f32.mrf.mxu0
  %v45 = vadd.f32 0.0, %v44
  %46 = vdwg.mxu0
  %v47 = vadd.f32 %v22, %v45
  %vm48 = vcmask 7168
  %49 = vst.msk [vmem:[#allocation2] sm:$0xff] %vm48, %v47
  // Predicated region
  $region14: #{tpu_custom_call.1} parent=0 // pred_check
    %p50 = pneg %p11
  $region15: #{tpu_custom_call.1} parent=0 // pred_check_branch
    %52 = sbr.rel (%p50) target = $region17
  $region16: #{tpu_custom_call.1} parent=0 // pred_region
    %v53 = vld [vmem:[#allocation2] sm:$0xff]
    %54 = vst.msk [vmem:[%s2] sm:$0xff] %vm48, %v53
  $region17: #{tpu_custom_call.1} parent=0 // pred_fallthru
    _
  // Predicated region
  $region18: #{tpu_custom_call.1} parent=0 // pred_check
    _
  $region19: #{tpu_custom_call.1} parent=0 // pred_check_branch
    %56 = sbr.rel (0) target = $region21
  $region20: #{tpu_custom_call.1} parent=0 // pred_region
    _
  $region21: #{tpu_custom_call.1} parent=0 // pred_fallthru
    _
  // Predicated region
  $region22: #{tpu_custom_call.1} parent=0 // pred_check
    _
  $region23: #{tpu_custom_call.1} parent=0 // pred_check_branch
    %58 = sbr.rel (0) target = $region25
  $region24: #{tpu_custom_call.1} parent=0 // pred_region
    _
  $region25: #{tpu_custom_call.1} parent=0 // pred_fallthru
    _

</llo_original>
